<compile_context>
chip_gen: v5e
topology: v5e:2x2
jax: 0.10.0
libtpu: 0.0.40
codegen_flags: <defaults>
</compile_context>

<pallas_src>
import functools

import jax
import jax.numpy as jnp
from jax.experimental import pallas as pl
from jax.experimental.pallas import tpu as pltpu

LANE = 128


def _round_up(x, m):
    return (x + m - 1) // m * m


def duel_q_kernel(x_ref, p_ref, out_ref, *,
                  s, a, width, off_w1, off_wh, off_wo, inv_count):
    # Packed-parameter layout (all `width` lanes wide, 8-row aligned segments):
    #   rows [0, 8)                 : row0 = b1, row1 = [ba1|bv1], row2 = [ba2|bv2, 0...]
    #   rows [off_w1, off_w1 + s)   : w1   (S, width)        (feature fc1)
    #   rows [off_wh, off_wh+width) : [wa1 | wv1] zero-padded (width, width)
    #   rows [off_wo, off_wo+width) : blockdiag(wa2, wv2) pad (width, width)
    x = x_ref[...]                                   # (B, S)

    b1 = p_ref[0:1, :]                               # (1, width)
    b_h = p_ref[1:2, :]
    b_o = p_ref[2:3, :]
    w1 = p_ref[off_w1:off_w1 + s, :]                 # (S, width)
    w_h = p_ref[off_wh:off_wh + width, :]            # (width, width)
    w_o = p_ref[off_wo:off_wo + width, :]            # (width, width)

    # feature_model: Linear(S -> H0) + ReLU   (padded lanes stay exactly 0)
    h = jnp.maximum(
        jnp.dot(x, w1, preferred_element_type=jnp.float32) + b1, 0.0)

    # fused head hidden layers: one 128-wide matmul instead of two 64-wide ones
    hh = jnp.maximum(
        jnp.dot(h, w_h, preferred_element_type=jnp.float32) + b_h, 0.0)

    # fused logits: z[:, :a] = advantage, z[:, a] = value, z[:, a+1:] = 0
    z = jnp.dot(hh, w_o, preferred_element_type=jnp.float32) + b_o

    col = jax.lax.broadcasted_iota(jnp.int32, z.shape, dimension=1)
    adv_mask = (col < a).astype(jnp.float32)         # exclude value/pad lanes from mean
    val_mask = (col == a).astype(jnp.float32)

    # global mean over the full (B, A) advantage block, as in the PyTorch module
    adv_mean = jnp.sum(z * adv_mask) * inv_count     # scalar, constant 1/(B*A)
    val = jnp.sum(z * val_mask, axis=1, keepdims=True)  # (B, 1)

    # Lane-dense store; columns >= a are sliced off by the wrapper.
    out_ref[...] = z + val - adv_mean


def pack_params(params, state_size, action_size):
    """Fuse + pad the 10 Linear params into one (rows, width) f32 buffer."""
    w1, b1, wa1, ba1, wa2, ba2, wv1, bv1, wv2, bv2 = [
        jnp.asarray(p, jnp.float32) for p in params]
    s, a = state_size, action_size
    h0, h1 = 2 * s * a, s * a

    # Fused head first layer: [wa1 | wv1]  -> (h0, 2*h1)
    w_h = jnp.concatenate([wa1, wv1], axis=1)
    b_h = jnp.concatenate([ba1, bv1], axis=1)
    # Fused head second layer: blockdiag(wa2, wv2) -> (2*h1, a+1)
    w_o = jnp.zeros((2 * h1, a + 1), jnp.float32)
    w_o = w_o.at[:h1, :a].set(wa2)
    w_o = w_o.at[h1:, a:a + 1].set(wv2)
    b_o = jnp.concatenate([ba2, bv2], axis=1)        # (1, a+1)

    width = max(_round_up(h0, LANE), _round_up(2 * h1, LANE),
                _round_up(a + 1, LANE))
    s_pad = _round_up(s, 8)

    def pad2(mat, rows, cols):
        r, c = mat.shape
        return jnp.pad(mat, ((0, rows - r), (0, cols - c)))

    bias_blk = jnp.zeros((8, width), jnp.float32)
    bias_blk = bias_blk.at[0, :h0].set(b1[0])
    bias_blk = bias_blk.at[1, :2 * h1].set(b_h[0])
    bias_blk = bias_blk.at[2, :a + 1].set(b_o[0])

    packed = jnp.concatenate([
        bias_blk,                      # rows [0, 8)
        pad2(w1, s_pad, width),        # rows [8, 8+s_pad)
        pad2(w_h, width, width),       # rows [8+s_pad, 8+s_pad+width)
        pad2(w_o, width, width),       # rows [8+s_pad+width, 8+s_pad+2*width)
    ], axis=0)

    offsets = dict(off_w1=8, off_wh=8 + s_pad, off_wo=8 + s_pad + width,
                   width=width)
    return packed, offsets


def duel_q_forward(x, params, state_size, action_size):
    B = x.shape[0]
    packed, meta = pack_params(params, state_size, action_size)
    width = meta["width"]

    kernel = functools.partial(
        duel_q_kernel,
        s=state_size, a=action_size, width=width,
        off_w1=meta["off_w1"], off_wh=meta["off_wh"], off_wo=meta["off_wo"],
        inv_count=1.0 / float(B * action_size))

    vmem = pl.BlockSpec(memory_space=pltpu.MemorySpace.VMEM)
    z = pl.pallas_call(
        kernel,
        out_shape=jax.ShapeDtypeStruct((B, width), jnp.float32),
        in_specs=[vmem, vmem],
        out_specs=vmem,
    )(x, packed)
    return z[:, :action_size]


def init_params(key, state_size, action_size):
    """Deterministic synthetic init (shapes match DuelQNetwork.__init__)."""
    h0 = 2 * state_size * action_size
    h1 = state_size * action_size
    shapes = [
        ((state_size, h0), (1, h0)),              # feature fc1
        ((h0, h1), (1, h1)),                      # advantage fc1
        ((h1, action_size), (1, action_size)),    # advantage logits
        ((h0, h1), (1, h1)),                      # value fc1
        ((h1, 1), (1, 1)),                        # value logits
    ]
    params = []
    for (w_shape, b_shape) in shapes:
        key, kw, kb = jax.random.split(key, 3)
        fan_in = w_shape[0]
        scale = 1.0 / jnp.sqrt(jnp.float32(fan_in))
        params.append(jax.random.uniform(kw, w_shape, jnp.float32, -scale, scale))
        params.append(jax.random.uniform(kb, b_shape, jnp.float32, -scale, scale))
    return tuple(params)


def reference_forward(x, params):
    (w1, b1, wa1, ba1, wa2, ba2, wv1, bv1, wv2, bv2) = params
    h = jax.nn.relu(x @ w1 + b1)
    adv = jax.nn.relu(h @ wa1 + ba1) @ wa2 + ba2
    val = jax.nn.relu(h @ wv1 + bv1) @ wv2 + bv2
    return val + adv - jnp.mean(adv)


if __name__ == "__main__":
    state_size = 16
    action_size = 4
    batch = 8

    key = jax.random.PRNGKey(0)
    key, kx = jax.random.split(key)
    x = jax.random.normal(kx, (batch, state_size), jnp.float32)
    params = init_params(key, state_size, action_size)

    out = duel_q_forward(x, params, state_size, action_size)
    out = jax.block_until_ready(out)

    ref = reference_forward(x, params)
    assert out.shape == (batch, action_size)
    assert jnp.allclose(out, ref, atol=1e-4, rtol=1e-4)

    print("KERNEL_OK")
</pallas_src>

<mosaic_0001>
module attributes {stable_mosaic.version = 11 : i64} {
  func.func @duel_q_kernel(%arg0: memref<8x16xf32, #tpu.memory_space<vmem>>, %arg1: memref<280x128xf32, #tpu.memory_space<vmem>>, %arg2: memref<8x128xf32, #tpu.memory_space<vmem>>) attributes {dimension_semantics = [], scalar_prefetch = 0 : i64, scratch_operands = 0 : i64, tpu.core_type = #tpu.core_type<tc>} {
    %c0 = arith.constant 0 : index
    %c0_0 = arith.constant 0 : index
    %0 = vector.load %arg0[%c0, %c0_0] : memref<8x16xf32, #tpu.memory_space<vmem>>, vector<8x16xf32>
    %c0_1 = arith.constant 0 : index
    %c0_2 = arith.constant 0 : index
    %1 = vector.load %arg1[%c0_1, %c0_2] : memref<280x128xf32, #tpu.memory_space<vmem>>, vector<1x128xf32>
    %c1 = arith.constant 1 : index
    %c0_3 = arith.constant 0 : index
    %2 = vector.load %arg1[%c1, %c0_3] : memref<280x128xf32, #tpu.memory_space<vmem>>, vector<1x128xf32>
    %c2 = arith.constant 2 : index
    %c0_4 = arith.constant 0 : index
    %3 = vector.load %arg1[%c2, %c0_4] : memref<280x128xf32, #tpu.memory_space<vmem>>, vector<1x128xf32>
    %c8 = arith.constant 8 : index
    %c0_5 = arith.constant 0 : index
    %4 = vector.load %arg1[%c8, %c0_5] : memref<280x128xf32, #tpu.memory_space<vmem>>, vector<16x128xf32>
    %c24 = arith.constant 24 : index
    %c0_6 = arith.constant 0 : index
    %5 = vector.load %arg1[%c24, %c0_6] : memref<280x128xf32, #tpu.memory_space<vmem>>, vector<128x128xf32>
    %c152 = arith.constant 152 : index
    %c0_7 = arith.constant 0 : index
    %6 = vector.load %arg1[%c152, %c0_7] : memref<280x128xf32, #tpu.memory_space<vmem>>, vector<128x128xf32>
    %cst = arith.constant dense<0.000000e+00> : vector<8x128xf32>
    %7 = tpu.matmul %0, %4, %cst {dimension_numbers = #tpu.dot_dimension_numbers<[1], [0], [0], [1], [0, 0, 1, 1], [], []>} : vector<8x16xf32>, vector<16x128xf32>, vector<8x128xf32> -> vector<8x128xf32>
    %8 = vector.broadcast %1 : vector<1x128xf32> to vector<8x128xf32>
    %9 = arith.addf %7, %8 : vector<8x128xf32>
    %cst_8 = arith.constant 0.000000e+00 : f32
    %10 = vector.broadcast %cst_8 : f32 to vector<8x128xf32>
    %11 = arith.maximumf %9, %10 : vector<8x128xf32>
    %cst_9 = arith.constant dense<0.000000e+00> : vector<8x128xf32>
    %12 = tpu.matmul %11, %5, %cst_9 {dimension_numbers = #tpu.dot_dimension_numbers<[1], [0], [0], [1], [0, 0, 1, 1], [], []>} : vector<8x128xf32>, vector<128x128xf32>, vector<8x128xf32> -> vector<8x128xf32>
    %13 = vector.broadcast %2 : vector<1x128xf32> to vector<8x128xf32>
    %14 = arith.addf %12, %13 : vector<8x128xf32>
    %cst_10 = arith.constant 0.000000e+00 : f32
    %15 = vector.broadcast %cst_10 : f32 to vector<8x128xf32>
    %16 = arith.maximumf %14, %15 : vector<8x128xf32>
    %cst_11 = arith.constant dense<0.000000e+00> : vector<8x128xf32>
    %17 = tpu.matmul %16, %6, %cst_11 {dimension_numbers = #tpu.dot_dimension_numbers<[1], [0], [0], [1], [0, 0, 1, 1], [], []>} : vector<8x128xf32>, vector<128x128xf32>, vector<8x128xf32> -> vector<8x128xf32>
    %18 = vector.broadcast %3 : vector<1x128xf32> to vector<8x128xf32>
    %19 = arith.addf %17, %18 : vector<8x128xf32>
    %20 = tpu.iota {dimensions = array<i32: 1>} : vector<8x128xi32>
    %c4_i32 = arith.constant 4 : i32
    %21 = vector.broadcast %c4_i32 : i32 to vector<8x128xi32>
    %22 = arith.cmpi slt, %20, %21 : vector<8x128xi32>
    %23 = arith.extui %22 : vector<8x128xi1> to vector<8x128xi32>
    %24 = arith.sitofp %23 : vector<8x128xi32> to vector<8x128xf32>
    %c4_i32_12 = arith.constant 4 : i32
    %25 = vector.broadcast %c4_i32_12 : i32 to vector<8x128xi32>
    %26 = arith.cmpi eq, %20, %25 : vector<8x128xi32>
    %27 = arith.extui %26 : vector<8x128xi1> to vector<8x128xi32>
    %28 = arith.sitofp %27 : vector<8x128xi32> to vector<8x128xf32>
    %29 = arith.mulf %19, %24 : vector<8x128xf32>
    %30 = vector.shape_cast %29 : vector<8x128xf32> to vector<1x8x128xf32>
    %cst_13 = arith.constant dense<0.000000e+00> : vector<1xf32>
    %31 = vector.multi_reduction <add>, %30, %cst_13 [1, 2] : vector<1x8x128xf32> to vector<1xf32>
    %32 = vector.shape_cast %31 : vector<1xf32> to vector<1x1x1xf32>
    %33 = vector.extract %32[0, 0, 0] : f32 from vector<1x1x1xf32>
    %cst_14 = arith.constant 3.125000e-02 : f32
    %34 = arith.mulf %33, %cst_14 : f32
    %35 = arith.mulf %19, %28 : vector<8x128xf32>
    %cst_15 = arith.constant dense<0.000000e+00> : vector<8xf32>
    %36 = vector.multi_reduction <add>, %35, %cst_15 [1] : vector<8x128xf32> to vector<8xf32>
    %37 = vector.shape_cast %36 : vector<8xf32> to vector<8x1xf32>
    %38 = vector.broadcast %37 : vector<8x1xf32> to vector<8x128xf32>
    %39 = arith.addf %19, %38 : vector<8x128xf32>
    %40 = vector.broadcast %34 : f32 to vector<8x128xf32>
    %41 = arith.subf %39, %40 : vector<8x128xf32>
    %c0_16 = arith.constant 0 : index
    %c0_17 = arith.constant 0 : index
    %42 = vector.load %arg2[%c0_16, %c0_17] : memref<8x128xf32, #tpu.memory_space<vmem>>, vector<8x128xf32>
    tpu.vector_store %arg2[%c0_16, %c0_17], %41 {strides = array<i32>} : memref<8x128xf32, #tpu.memory_space<vmem>>, vector<8x128xf32>,
    return
  }
}

</mosaic_0001>

<llo_original>
// kernel: tpu_custom_call.1
$region0: #{tpu_custom_call.1}
  #allocation0 [shape = 'u32[]', space=smem, size = 0x4, offset = 0x4, fixed_abs, tag = 'smem constant byte address 0x4 - core index']
  #allocation1 [shape = 'u32[72,128]{1,0:T(1,128)}', space=vmem, size = 0x9000, scoped, tag = 'internal scratch']
  %s0 = inlined_call_operand.hbm [shape: f32[8,16], index: 0, kind: input, shape index: {}]
  %s1 = inlined_call_operand.hbm [shape: f32[280,128], index: 1, kind: input, shape index: {}]
  %s2 = inlined_call_operand.hbm [shape: f32[8,128], index: 2, kind: output, shape index: {}]
  %s3 = sld [smem:[#allocation0]]
  $region26: #{tpu_custom_call.1} parent=0
    _
  %s5 = ssub.s32 1, %s3
  %s6 = scalar_select 0, %s5, %s3
  $region1: #{tpu_custom_call.1} parent=0
    #allocation2 [shape = 'u8[4096]{0}', space=vmem, size = 0x1000, scoped, tag = 'input window, operand 0, single buffered']
    #allocation3 [shape = 's32[1]{0}', space=sflag, size = 0x4, scoped, tag = 'scoped memory for tpu_custom_call.1']
    #allocation4 [shape = 's32[1]{0}', space=sflag, size = 0x4, scoped, tag = 'scoped memory for tpu_custom_call.1']
    #allocation5 [shape = 'u8[143360]{0}', space=vmem, size = 0x23000, scoped, tag = 'input window, operand 1, single buffered']
    #allocation6 [shape = 's32[1]{0}', space=sflag, size = 0x4, scoped, tag = 'scoped memory for tpu_custom_call.1']
    #allocation7 [shape = 'u8[4096]{0}', space=vmem, size = 0x1000, scoped, tag = 'output window, operand 0, single buffered']
    %7 = vsyncpa [#allocation3], 0
    %8 = vsyncpa [#allocation6], 0
    %9 = vsyncpa [#allocation4], 0
    // Predicated region
    $region2: #{tpu_custom_call.1} parent=1 // pred_check
      _
    $region3: #{tpu_custom_call.1} parent=1 // pred_check_branch
      %11 = sbr.rel (0) target = $region5
    $region4: #{tpu_custom_call.1} parent=1 // pred_region
      %13 = vsyncadd [#allocation3], 0
      %s15 = sshll.u32 %s0, 4
      %s16 = int_to_ptr.hbm [resolvable:$true] %s15
      %s17 = sshll.u32 [#allocation2], 4
      %s18 = int_to_ptr.vmem [resolvable:$true] %s17
      %20 = dma.hbm_to_vmem [thread:$0]  %s16, 128, %s18, [#allocation3]
    $region5: #{tpu_custom_call.1} parent=1 // pred_fallthru
      _
    // Predicated region
    $region6: #{tpu_custom_call.1} parent=1 // pred_check
      _
    $region7: #{tpu_custom_call.1} parent=1 // pred_check_branch
      %22 = sbr.rel (0) target = $region9
    $region8: #{tpu_custom_call.1} parent=1 // pred_region
      %24 = vsyncadd [#allocation6], 0
      %s25 = sshll.u32 %s1, 4
      %s26 = int_to_ptr.hbm [resolvable:$true] %s25
      %s27 = sshll.u32 [#allocation5], 4
      %s28 = int_to_ptr.vmem [resolvable:$true] %s27
      %33 = dma.hbm_to_vmem [thread:$0]  %s26, 4480, %s28, [#allocation6], 128, 128, 8
    $region9: #{tpu_custom_call.1} parent=1 // pred_fallthru
      _
    // Predicated region
    $region10: #{tpu_custom_call.1} parent=1 // pred_check
      _
    $region11: #{tpu_custom_call.1} parent=1 // pred_check_branch
      %35 = sbr.rel (0) target = $region13
    $region12: #{tpu_custom_call.1} parent=1 // pred_region
      %37 = dma.done [#allocation3], 128
    $region13: #{tpu_custom_call.1} parent=1 // pred_fallthru
      _
    // Predicated region
    $region14: #{tpu_custom_call.1} parent=1 // pred_check
      _
    $region15: #{tpu_custom_call.1} parent=1 // pred_check_branch
      %39 = sbr.rel (0) target = $region17
    $region16: #{tpu_custom_call.1} parent=1 // pred_region
      %41 = dma.done [#allocation6], 4480
    $region17: #{tpu_custom_call.1} parent=1 // pred_fallthru
      _
    %v42 = vld [vmem:[#allocation2] sm:$0xff]
    %v43 = vld [vmem:[#allocation5] sm:$0x1]
    %v44 = vld [vmem:[#allocation5 + $0x1] sm:$0x1]
    %v45 = vld [vmem:[#allocation5 + $0x2] sm:$0x1]
    %v46 = vld [vmem:[#allocation5 + $0x8] sm:$0xff]
    %v47 = vld [vmem:[#allocation5 + $0x10] sm:$0xff]
    %v48 = vld [vmem:[#allocation5 + $0x18] sm:$0xff]
    %v49 = vld [vmem:[#allocation5 + $0x20] sm:$0xff]
    %v50 = vld [vmem:[#allocation5 + $0x28] sm:$0xff]
    %v51 = vld [vmem:[#allocation5 + $0x30] sm:$0xff]
    %v52 = vld [vmem:[#allocation5 + $0x38] sm:$0xff]
    %v53 = vld [vmem:[#allocation5 + $0x40] sm:$0xff]
    %v54 = vld [vmem:[#allocation5 + $0x48] sm:$0xff]
    %v55 = vld [vmem:[#allocation5 + $0x50] sm:$0xff]
    %v56 = vld [vmem:[#allocation5 + $0x58] sm:$0xff]
    %v57 = vld [vmem:[#allocation5 + $0x60] sm:$0xff]
    %v58 = vld [vmem:[#allocation5 + $0x68] sm:$0xff]
    %v59 = vld [vmem:[#allocation5 + $0x70] sm:$0xff]
    %v60 = vld [vmem:[#allocation5 + $0x78] sm:$0xff]
    %v61 = vld [vmem:[#allocation5 + $0x80] sm:$0xff]
    %v62 = vld [vmem:[#allocation5 + $0x88] sm:$0xff]
    %v63 = vld [vmem:[#allocation5 + $0x90] sm:$0xff]
    %v64 = vld [vmem:[#allocation5 + $0x98] sm:$0xff]
    %v65 = vld [vmem:[#allocation5 + $0xa0] sm:$0xff]
    %v66 = vld [vmem:[#allocation5 + $0xa8] sm:$0xff]
    %v67 = vld [vmem:[#allocation5 + $0xb0] sm:$0xff]
    %v68 = vld [vmem:[#allocation5 + $0xb8] sm:$0xff]
    %v69 = vld [vmem:[#allocation5 + $0xc0] sm:$0xff]
    %v70 = vld [vmem:[#allocation5 + $0xc8] sm:$0xff]
    %v71 = vld [vmem:[#allocation5 + $0xd0] sm:$0xff]
    %v72 = vld [vmem:[#allocation5 + $0xd8] sm:$0xff]
    %v73 = vld [vmem:[#allocation5 + $0xe0] sm:$0xff]
    %v74 = vld [vmem:[#allocation5 + $0xe8] sm:$0xff]
    %v75 = vld [vmem:[#allocation5 + $0xf0] sm:$0xff]
    %v76 = vld [vmem:[#allocation5 + $0xf8] sm:$0xff]
    %v77 = vld [vmem:[#allocation5 + $0x100] sm:$0xff]
    %v78 = vld [vmem:[#allocation5 + $0x108] sm:$0xff]
    %v79 = vld [vmem:[#allocation5 + $0x110] sm:$0xff]
    %v80 = vperm.slane %v43, 0
    %vm81 = vcmask 130048
    %v83 = vsel %vm81, %v42, 0
    %85 = vmatpush.msra.mxu0 0.0
    %86 = vmatpush.msra.mxu0 0.0
    %87 = vmatpush.msra.mxu0 0.0
    %88 = vmatpush.msra.mxu0 0.0
    %89 = vmatpush.msra.mxu0 0.0
    %90 = vmatpush.msra.mxu0 0.0
    %91 = vmatpush.msra.mxu0 0.0
    %92 = vmatpush.msra.mxu0 0.0
    %93 = vmatpush.msra.mxu0 0.0
    %94 = vmatpush.msra.mxu0 0.0
    %95 = vmatpush.msra.mxu0 0.0
    %96 = vmatpush.msra.mxu0 0.0
    %97 = vmatpush.msra.mxu0 0.0
    %98 = vmatpush.msra.mxu0 0.0
    %99 = vmatpush.msra.mxu0 %v47
    %100 = vmatpush.msra.mxu0 %v46
    %101 = vmatmul.f32.gmra.mxu0 %v83
    %v102 = vpop.f32.mrf.mxu0
    %v103 = vadd.f32 %v80, %v102
    %104 = vdwg.mxu0
    %v105 = vmax.f32 %v103, 0.0
    %v106 = vperm.slane %v44, 0
    %107 = vmatpush.msra.mxu0 %v63
    %108 = vmatpush.msra.mxu0 %v62
    %109 = vmatpush.msra.mxu0 %v61
    %110 = vmatpush.msra.mxu0 %v60
    %111 = vmatpush.msra.mxu0 %v59
    %112 = vmatpush.msra.mxu0 %v58
    %113 = vmatpush.msra.mxu0 %v57
    %114 = vmatpush.msra.mxu0 %v56
    %115 = vmatpush.msra.mxu0 %v55
    %116 = vmatpush.msra.mxu0 %v54
    %117 = vmatpush.msra.mxu0 %v53
    %118 = vmatpush.msra.mxu0 %v52
    %119 = vmatpush.msra.mxu0 %v51
    %120 = vmatpush.msra.mxu0 %v50
    %121 = vmatpush.msra.mxu0 %v49
    %122 = vmatpush.msra.mxu0 %v48
    %123 = vmatmul.f32.gmra.mxu0 %v105
    %v124 = vpop.f32.mrf.mxu0
    %v125 = vadd.f32 %v106, %v124
    %126 = vdwg.mxu0
    %v127 = vmax.f32 %v125, 0.0
    %v128 = vperm.slane %v45, 0
    %129 = vmatpush.msra.mxu0 %v79
    %130 = vmatpush.msra.mxu0 %v78
    %131 = vmatpush.msra.mxu0 %v77
    %132 = vmatpush.msra.mxu0 %v76
    %133 = vmatpush.msra.mxu0 %v75
    %134 = vmatpush.msra.mxu0 %v74
    %135 = vmatpush.msra.mxu0 %v73
    %136 = vmatpush.msra.mxu0 %v72
    %137 = vmatpush.msra.mxu0 %v71
    %138 = vmatpush.msra.mxu0 %v70
    %139 = vmatpush.msra.mxu0 %v69
    %140 = vmatpush.msra.mxu0 %v68
    %141 = vmatpush.msra.mxu0 %v67
    %142 = vmatpush.msra.mxu0 %v66
    %143 = vmatpush.msra.mxu0 %v65
    %144 = vmatpush.msra.mxu0 %v64
    %145 = vmatmul.f32.gmra.mxu0 %v127
    %v146 = vpop.f32.mrf.mxu0
    %v147 = vadd.f32 %v128, %v146
    %148 = vdwg.mxu0
    %v149 = vlaneseq
    %v150 = vand.u32 %v149, 127
    %vm151 = vcmp.lt.s32.totalorder %v150, 4
    %v152 = vsel %vm151, 1, 0
    %v153 = vcvt.s32.f32 %v152
    %vm154 = vcmp.eq.s32.totalorder %v150, 4
    %v155 = vsel %vm154, 1, 0
    %v156 = vcvt.s32.f32 %v155
    %v157 = vmul.f32 %v147, %v153
    %158 = vadd.xlane.f32.xlu0 %v157
    %v159 = vpop.xlane.xlu0 %158
    %v160 = vrot.slane %v159, 4
    %v161 = vadd.f32 %v159, %v160
    %v162 = vrot.slane %v161, 2
    %v163 = vadd.f32 %v161, %v162
    %v164 = vrot.slane %v163, 1
    %v165 = vadd.f32 %v163, %v164
    %s166 = vtos %v165
    %s167 = smul.f32 %s166, 0.03125
    %v168 = vmul.f32 %v147, %v156
    %169 = vadd.xlane.f32.xlu0 %v168
    %v170 = vpop.xlane.xlu0 %169
    %v171 = vadd.f32 %v147, %v170
    %v172 = vstv %s167
    %v173 = vsub.f32 %v171, %v172
    %174 = vst [vmem:[#allocation7] sm:$0xff] %v173
    // Predicated region
    $region18: #{tpu_custom_call.1} parent=1 // pred_check
      _
    $region19: #{tpu_custom_call.1} parent=1 // pred_check_branch
      %176 = sbr.rel (0) target = $region21
    $region20: #{tpu_custom_call.1} parent=1 // pred_region
      %178 = vsyncadd [#allocation4], 0
      %s180 = sshll.u32 [#allocation7], 4
      %s181 = int_to_ptr.vmem [resolvable:$true] %s180
      %s182 = sshll.u32 %s2, 4
      %s183 = int_to_ptr.hbm [resolvable:$true] %s182
      %185 = dma.vmem_to_hbm [thread:$0]  %s181, 128, %s183, [#allocation4]
    $region21: #{tpu_custom_call.1} parent=1 // pred_fallthru
      _
    // Predicated region
    $region22: #{tpu_custom_call.1} parent=1 // pred_check
      _
    $region23: #{tpu_custom_call.1} parent=1 // pred_check_branch
      %187 = sbr.rel (0) target = $region25
    $region24: #{tpu_custom_call.1} parent=1 // pred_region
      %189 = dma.done [#allocation4], 128
    $region25: #{tpu_custom_call.1} parent=1 // pred_fallthru
      _
    %190 = vsyncpa [#allocation3], 1
    %191 = vsyncpa [#allocation6], 1
    %192 = vsyncpa [#allocation4], 1

</llo_original>
